<compile_context>
chip_gen: v6e
topology: v6e:2x2x1
jax: 0.10.0
libtpu: 0.0.40
codegen_flags: <defaults>
</compile_context>

<pallas_src>
import jax
import jax.numpy as jnp
from jax.experimental import pallas as pl
from jax.experimental.pallas import tpu as pltpu

LANE = 128


# ----------------------------- Pallas kernel ------------------------------ #
def _matmul_bias_kernel(x_ref, w_ref, b_ref, o_ref):
    # x: (tm, K) bf16   w: (K, Np) bf16   b: (1, Np) f32   o: (tm, Np) f32
    acc = jnp.dot(x_ref[...], w_ref[...], preferred_element_type=jnp.float32)
    o_ref[...] = (acc + b_ref[...]).astype(o_ref.dtype)


def _choose_tm(M):
    # Larger tiles amortize the ~0.35us per-grid-step overhead; keep at least
    # two steps when possible so the 'parallel' axis can use both TensorCores.
    for tm in (512, 256, 128):
        if M >= 2 * tm:
            return tm
    return min(M, 128)


def _matmul_bias(x_bf16, w_bf16, b_f32):
    """out = x @ w + b, tiled over rows.  w/b are lane-padded (Np % 128 == 0)."""
    M, K = x_bf16.shape
    K2, Np = w_bf16.shape
    assert K == K2 and Np % LANE == 0
    tm = _choose_tm(M)
    return pl.pallas_call(
        _matmul_bias_kernel,
        out_shape=jax.ShapeDtypeStruct((M, Np), jnp.float32),
        grid=(pl.cdiv(M, tm),),
        in_specs=[
            pl.BlockSpec((tm, K), lambda i: (i, 0)),
            pl.BlockSpec((K, Np), lambda i: (0, 0)),
            pl.BlockSpec((1, Np), lambda i: (0, 0)),
        ],
        out_specs=pl.BlockSpec((tm, Np), lambda i: (i, 0)),
        compiler_params=pltpu.CompilerParams(
            dimension_semantics=("parallel",),
            vmem_limit_bytes=32 * 1024 * 1024,
        ),
    )(x_bf16, w_bf16, b_f32.reshape(1, Np))


# --------------------------- weight / data prep ---------------------------- #
def _to_patch_weight(w_hwio):
    # (kh, kw, Cin, Cout) -> (Cin*kh*kw, Cout); rows ordered (c, kh, kw) to
    # match lax.conv_general_dilated_patches' output feature order.
    kh, kw, cin, cout = w_hwio.shape
    return jnp.transpose(w_hwio, (2, 0, 1, 3)).reshape(cin * kh * kw, cout)


def _pad_lanes(w_mat, b_vec):
    # Zero-pad the output-channel axis to a multiple of 128 so the Pallas
    # kernel's output stores are unmasked (lane-dense).
    K, cout = w_mat.shape
    Np = pl.cdiv(cout, LANE) * LANE
    w_p = jnp.zeros((K, Np), jnp.bfloat16).at[:, :cout].set(
        w_mat.astype(jnp.bfloat16))
    b_p = jnp.zeros((Np,), jnp.float32).at[:cout].set(b_vec.astype(jnp.float32))
    return w_p, b_p


def _im2col_3x3(x_nhwc, stride):
    # Single fused XLA gather; output feature index = c*9 + kh*3 + kw.
    # NOTE: the 9x patch tensor is still materialized by XLA (the review's
    # "minimal" option); generating it in-kernel via a 9-tap accumulation is
    # the next optimization step.
    n, h, w, c = x_nhwc.shape
    p = jax.lax.conv_general_dilated_patches(
        x_nhwc, filter_shape=(3, 3), window_strides=(stride, stride),
        padding=((1, 1), (1, 1)),
        dimension_numbers=("NHWC", "HWIO", "NHWC"))
    _, ho, wo, kf = p.shape
    return p.reshape(n * ho * wo, kf), (n, ho, wo)


# ------------------------------ MSFB module ------------------------------- #
def init_msfb_params(key, inchannel, outchannel, dtype=jnp.float32):
    ks = jax.random.split(key, 8)
    s = 0.1
    return {
        "w1":      (jax.random.normal(ks[0], (inchannel, outchannel)) * s).astype(dtype),
        "b1":      (jax.random.normal(ks[1], (outchannel,)) * s).astype(dtype),
        "w3_s1":   (jax.random.normal(ks[2], (3, 3, outchannel, outchannel)) * s).astype(dtype),
        "b3_s1":   (jax.random.normal(ks[3], (outchannel,)) * s).astype(dtype),
        "w3_s2_1": (jax.random.normal(ks[4], (3, 3, inchannel, outchannel)) * s).astype(dtype),
        "b3_s2_1": (jax.random.normal(ks[5], (outchannel,)) * s).astype(dtype),
        "w3_s2_2": (jax.random.normal(ks[6], (3, 3, inchannel, outchannel)) * s).astype(dtype),
        "b3_s2_2": (jax.random.normal(ks[7], (outchannel,)) * s).astype(dtype),
    }


@jax.jit
def msfb_forward(x_nchw, params):
    cout = params["b1"].shape[0]
    x = jnp.transpose(x_nchw, (0, 2, 3, 1)).astype(jnp.bfloat16)   # NCHW -> NHWC

    # --- stage 1: all three stride-2 branches fused into one matmul -------- #
    # A 1x1 stride-2 pad-0 conv equals a 3x3 stride-2 pad-1 conv whose only
    # non-zero tap is the center, so it shares the stride-2 im2col.
    w1_3x3 = jnp.zeros((3, 3) + params["w1"].shape, params["w1"].dtype)
    w1_3x3 = w1_3x3.at[1, 1].set(params["w1"])
    w_s2 = jnp.concatenate(
        [_to_patch_weight(w1_3x3),
         _to_patch_weight(params["w3_s2_1"]),
         _to_patch_weight(params["w3_s2_2"])], axis=-1)            # (9*Cin, 3*Cout)
    b_s2 = jnp.concatenate(
        [params["b1"], params["b3_s2_1"], params["b3_s2_2"]])
    w_s2, b_s2 = _pad_lanes(w_s2, b_s2)

    x_cols, (n, ho, wo) = _im2col_3x3(x, stride=2)
    y_s2 = _matmul_bias(x_cols, w_s2, b_s2)                        # (M, 128) f32
    x13 = y_s2[:, :2 * cout]                                       # [x1 | x3]
    t = y_s2[:, 2 * cout:3 * cout].reshape(n, ho, wo, cout)

    # --- stage 2: 3x3 stride-1 conv on t (the x5 branch) ------------------- #
    w_s1, b_s1 = _pad_lanes(_to_patch_weight(params["w3_s1"]), params["b3_s1"])
    t_cols, _ = _im2col_3x3(t.astype(jnp.bfloat16), stride=1)
    x5 = _matmul_bias(t_cols, w_s1, b_s1)[:, :cout]

    out = jnp.concatenate([x13, x5], axis=-1).reshape(n, ho, wo, 3 * cout)
    return jnp.transpose(out, (0, 3, 1, 2))                        # NHWC -> NCHW


# ----------------------------- reference path ------------------------------ #
def _ref_conv(x_nchw, w_hwio, b, stride, padding):
    w_oihw = jnp.transpose(w_hwio, (3, 2, 0, 1))
    y = jax.lax.conv_general_dilated(
        x_nchw, w_oihw, window_strides=(stride, stride),
        padding=[(padding, padding), (padding, padding)],
        dimension_numbers=("NCHW", "OIHW", "NCHW"))
    return y + b.reshape(1, -1, 1, 1)


def msfb_forward_ref(x_nchw, params):
    w1 = params["w1"].reshape(1, 1, *params["w1"].shape)
    x1 = _ref_conv(x_nchw, w1, params["b1"], 2, 0)
    x3 = _ref_conv(x_nchw, params["w3_s2_1"], params["b3_s2_1"], 2, 1)
    t = _ref_conv(x_nchw, params["w3_s2_2"], params["b3_s2_2"], 2, 1)
    x5 = _ref_conv(t, params["w3_s1"], params["b3_s1"], 1, 1)
    return jnp.concatenate([x1, x3, x5], axis=1)


# --------------------------------- main ------------------------------------ #
if __name__ == "__main__":
    key = jax.random.PRNGKey(0)
    k_x, k_p = jax.random.split(key)

    N, Cin, Cout, H, W = 2, 4, 8, 16, 16
    x = jax.random.normal(k_x, (N, Cin, H, W), dtype=jnp.float32)
    params = init_msfb_params(k_p, Cin, Cout)

    out = jax.block_until_ready(msfb_forward(x, params))
    assert out.shape == (N, 3 * Cout, H // 2, W // 2), out.shape

    ref = jax.block_until_ready(msfb_forward_ref(x, params))
    max_err = float(jnp.max(jnp.abs(out - ref)))
    # bf16 MXU operands (f32 accumulation) vs. default-precision conv reference
    assert jnp.allclose(out, ref, rtol=3e-2, atol=3e-2), max_err

    print("KERNEL_OK")
</pallas_src>

<mosaic_0001>
module attributes {stable_mosaic.version = 11 : i64} {
  func.func @_matmul_bias_kernel(%arg0: i32, %arg1: memref<128x36xbf16, #tpu.memory_space<vmem>>, %arg2: memref<36x128xbf16, #tpu.memory_space<vmem>>, %arg3: memref<1x128xf32, #tpu.memory_space<vmem>>, %arg4: memref<128x128xf32, #tpu.memory_space<vmem>>) attributes {dimension_semantics = [#tpu.dimension_semantics<parallel>], iteration_bounds = array<i64: 1>, scalar_prefetch = 0 : i64, scratch_operands = 0 : i64, tpu.core_type = #tpu.core_type<tc>, window_params = [{transform_indices = @transform_0, window_bounds = array<i64: 128, 36>}, {pipeline_mode = #tpu.pipeline_mode<synchronous>, transform_indices = @transform_1, window_bounds = array<i64: 36, 128>}, {pipeline_mode = #tpu.pipeline_mode<synchronous>, transform_indices = @transform_2, window_bounds = array<i64: 1, 128>}, {transform_indices = @transform_3, window_bounds = array<i64: 128, 128>}]} {
    %c0 = arith.constant 0 : index
    %c0_0 = arith.constant 0 : index
    %0 = vector.load %arg1[%c0, %c0_0] : memref<128x36xbf16, #tpu.memory_space<vmem>>, vector<128x36xbf16>
    %c0_1 = arith.constant 0 : index
    %c0_2 = arith.constant 0 : index
    %1 = vector.load %arg2[%c0_1, %c0_2] : memref<36x128xbf16, #tpu.memory_space<vmem>>, vector<36x128xbf16>
    %cst = arith.constant dense<0.000000e+00> : vector<128x128xf32>
    %2 = tpu.matmul %0, %1, %cst {dimension_numbers = #tpu.dot_dimension_numbers<[1], [0], [0], [1], [0, 0, 1, 1], [], []>} : vector<128x36xbf16>, vector<36x128xbf16>, vector<128x128xf32> -> vector<128x128xf32>
    %c0_3 = arith.constant 0 : index
    %c0_4 = arith.constant 0 : index
    %3 = vector.load %arg3[%c0_3, %c0_4] : memref<1x128xf32, #tpu.memory_space<vmem>>, vector<1x128xf32>
    %4 = vector.broadcast %3 : vector<1x128xf32> to vector<128x128xf32>
    %5 = arith.addf %2, %4 : vector<128x128xf32>
    %c0_5 = arith.constant 0 : index
    %c0_6 = arith.constant 0 : index
    %6 = vector.load %arg4[%c0_5, %c0_6] : memref<128x128xf32, #tpu.memory_space<vmem>>, vector<128x128xf32>
    tpu.vector_store %arg4[%c0_5, %c0_6], %5 {strides = array<i32>} : memref<128x128xf32, #tpu.memory_space<vmem>>, vector<128x128xf32>,
    return
  }
  func.func @transform_0(%arg0: i32) -> (i32, i32) {
    %c0_i32 = arith.constant 0 : i32
    %c0_i32_0 = arith.constant 0 : i32
    return %arg0, %c0_i32 : i32, i32
  }
  func.func @transform_1(%arg0: i32) -> (i32, i32) {
    %c0_i32 = arith.constant 0 : i32
    %c0_i32_0 = arith.constant 0 : i32
    %c0_i32_1 = arith.constant 0 : i32
    return %c0_i32, %c0_i32_0 : i32, i32
  }
  func.func @transform_2(%arg0: i32) -> (i32, i32) {
    %c0_i32 = arith.constant 0 : i32
    %c0_i32_0 = arith.constant 0 : i32
    %c0_i32_1 = arith.constant 0 : i32
    return %c0_i32, %c0_i32_0 : i32, i32
  }
  func.func @transform_3(%arg0: i32) -> (i32, i32) {
    %c0_i32 = arith.constant 0 : i32
    %c0_i32_0 = arith.constant 0 : i32
    return %arg0, %c0_i32 : i32, i32
  }
}

module attributes {stable_mosaic.version = 11 : i64} {
  func.func @_matmul_bias_kernel(%arg0: i32, %arg1: memref<128x72xbf16, #tpu.memory_space<vmem>>, %arg2: memref<72x128xbf16, #tpu.memory_space<vmem>>, %arg3: memref<1x128xf32, #tpu.memory_space<vmem>>, %arg4: memref<128x128xf32, #tpu.memory_space<vmem>>) attributes {dimension_semantics = [#tpu.dimension_semantics<parallel>], iteration_bounds = array<i64: 1>, scalar_prefetch = 0 : i64, scratch_operands = 0 : i64, tpu.core_type = #tpu.core_type<tc>, window_params = [{transform_indices = @transform_0, window_bounds = array<i64: 128, 72>}, {pipeline_mode = #tpu.pipeline_mode<synchronous>, transform_indices = @transform_1, window_bounds = array<i64: 72, 128>}, {pipeline_mode = #tpu.pipeline_mode<synchronous>, transform_indices = @transform_2, window_bounds = array<i64: 1, 128>}, {transform_indices = @transform_3, window_bounds = array<i64: 128, 128>}]} {
    %c0 = arith.constant 0 : index
    %c0_0 = arith.constant 0 : index
    %0 = vector.load %arg1[%c0, %c0_0] : memref<128x72xbf16, #tpu.memory_space<vmem>>, vector<128x72xbf16>
    %c0_1 = arith.constant 0 : index
    %c0_2 = arith.constant 0 : index
    %1 = vector.load %arg2[%c0_1, %c0_2] : memref<72x128xbf16, #tpu.memory_space<vmem>>, vector<72x128xbf16>
    %cst = arith.constant dense<0.000000e+00> : vector<128x128xf32>
    %2 = tpu.matmul %0, %1, %cst {dimension_numbers = #tpu.dot_dimension_numbers<[1], [0], [0], [1], [0, 0, 1, 1], [], []>} : vector<128x72xbf16>, vector<72x128xbf16>, vector<128x128xf32> -> vector<128x128xf32>
    %c0_3 = arith.constant 0 : index
    %c0_4 = arith.constant 0 : index
    %3 = vector.load %arg3[%c0_3, %c0_4] : memref<1x128xf32, #tpu.memory_space<vmem>>, vector<1x128xf32>
    %4 = vector.broadcast %3 : vector<1x128xf32> to vector<128x128xf32>
    %5 = arith.addf %2, %4 : vector<128x128xf32>
    %c0_5 = arith.constant 0 : index
    %c0_6 = arith.constant 0 : index
    %6 = vector.load %arg4[%c0_5, %c0_6] : memref<128x128xf32, #tpu.memory_space<vmem>>, vector<128x128xf32>
    tpu.vector_store %arg4[%c0_5, %c0_6], %5 {strides = array<i32>} : memref<128x128xf32, #tpu.memory_space<vmem>>, vector<128x128xf32>,
    return
  }
  func.func @transform_0(%arg0: i32) -> (i32, i32) {
    %c0_i32 = arith.constant 0 : i32
    %c0_i32_0 = arith.constant 0 : i32
    return %arg0, %c0_i32 : i32, i32
  }
  func.func @transform_1(%arg0: i32) -> (i32, i32) {
    %c0_i32 = arith.constant 0 : i32
    %c0_i32_0 = arith.constant 0 : i32
    %c0_i32_1 = arith.constant 0 : i32
    return %c0_i32, %c0_i32_0 : i32, i32
  }
  func.func @transform_2(%arg0: i32) -> (i32, i32) {
    %c0_i32 = arith.constant 0 : i32
    %c0_i32_0 = arith.constant 0 : i32
    %c0_i32_1 = arith.constant 0 : i32
    return %c0_i32, %c0_i32_0 : i32, i32
  }
  func.func @transform_3(%arg0: i32) -> (i32, i32) {
    %c0_i32 = arith.constant 0 : i32
    %c0_i32_0 = arith.constant 0 : i32
    return %arg0, %c0_i32 : i32, i32
  }
}

</mosaic_0001>

<llo_original>
// kernel: msfb_forward.2
$region0: #{msfb_forward.2}
  #allocation0 [shape = 'u32[]', space=smem, size = 0x4, offset = 0x4, fixed_abs, tag = 'smem constant byte address 0x4 - core index']
  #allocation1 [shape = 'u32[144,128]{1,0:T(1,128)}', space=vmem, size = 0x12000, scoped, tag = 'internal scratch']
  %s0 = inlined_call_operand.vmem [shape: bf16[128,36], index: 0, kind: input, shape index: {}]
  %s1 = inlined_call_operand.vmem [shape: bf16[36,128], index: 1, kind: input, shape index: {}]
  %s2 = inlined_call_operand.vmem [shape: f32[1,128], index: 2, kind: input, shape index: {}]
  %s3 = inlined_call_operand.vmem [shape: f32[128,128], index: 3, kind: output, shape index: {}]
  %s4 = sld [smem:[#allocation0]]
  $region22: #{msfb_forward.2} parent=0
    _
  %s6 = ssub.s32 1, %s4
  %s7 = scalar_select 0, %s6, %s4
  // Predicated region
  $region2: #{msfb_forward.2} parent=0 // pred_check
    _
  $region3: #{msfb_forward.2} parent=0 // pred_check_branch
    %9 = sbr.rel (0) target = $region5
  $region4: #{msfb_forward.2} parent=0 // pred_region
    _
  $region5: #{msfb_forward.2} parent=0 // pred_fallthru
    _
  // Predicated region
  $region6: #{msfb_forward.2} parent=0 // pred_check
    _
  $region7: #{msfb_forward.2} parent=0 // pred_check_branch
    %11 = sbr.rel (0) target = $region9
  $region8: #{msfb_forward.2} parent=0 // pred_region
    _
  $region9: #{msfb_forward.2} parent=0 // pred_fallthru
    _
  // Predicated region
  $region10: #{msfb_forward.2} parent=0 // pred_check
    _
  $region11: #{msfb_forward.2} parent=0 // pred_check_branch
    %13 = sbr.rel (0) target = $region13
  $region12: #{msfb_forward.2} parent=0 // pred_region
    _
  $region13: #{msfb_forward.2} parent=0 // pred_fallthru
    _
  %v15 = vld [vmem:[%s0] sm:$0xf]
  %v16 = vld [vmem:[%s0 + $0x4] sm:$0xf]
  %v17 = vld [vmem:[%s0 + $0x8] sm:$0xf]
  %v18 = vld [vmem:[%s0 + $0xc] sm:$0xf]
  %v19 = vld [vmem:[%s0 + $0x10] sm:$0xf]
  %v20 = vld [vmem:[%s0 + $0x14] sm:$0xf]
  %v21 = vld [vmem:[%s0 + $0x18] sm:$0xf]
  %v22 = vld [vmem:[%s0 + $0x1c] sm:$0xf]
  %v23 = vld [vmem:[%s0 + $0x20] sm:$0xf]
  %v24 = vld [vmem:[%s0 + $0x24] sm:$0xf]
  %v25 = vld [vmem:[%s0 + $0x28] sm:$0xf]
  %v26 = vld [vmem:[%s0 + $0x2c] sm:$0xf]
  %v27 = vld [vmem:[%s0 + $0x30] sm:$0xf]
  %v28 = vld [vmem:[%s0 + $0x34] sm:$0xf]
  %v29 = vld [vmem:[%s0 + $0x38] sm:$0xf]
  %v30 = vld [vmem:[%s0 + $0x3c] sm:$0xf]
  %v31 = vld [vmem:[%s1] sm:$0xf]
  %v32 = vld [vmem:[%s1 + $0x4] sm:$0xf]
  %v33 = vld [vmem:[%s1 + $0x8] sm:$0xf]
  %v34 = vld [vmem:[%s1 + $0xc] sm:$0xf]
  %v35 = vld [vmem:[%s1 + $0x10] sm:$0x3]
  %v36 = vld [vmem:[%s2] sm:$0x1]
  %v38 = vlaneseq
  %v39 = vshrl.u32 %v38, 7
  %v40 = vsub.s32 0, %v39
  %v41 = vrot.slane %v36, %v40
  %v59 = vunpack.c.l.b16 %v15
  %v60 = vunpack.c.l.b16 %v16
  %v61 = vunpack.c.l.b16 %v17
  %v62 = vunpack.c.l.b16 %v18
  %v63 = vunpack.c.l.b16 %v19
  %v64 = vunpack.c.l.b16 %v20
  %v65 = vunpack.c.l.b16 %v21
  %v66 = vunpack.c.l.b16 %v22
  %v67 = vunpack.c.l.b16 %v23
  %v68 = vunpack.c.l.b16 %v24
  %v69 = vunpack.c.l.b16 %v25
  %v70 = vunpack.c.l.b16 %v26
  %v71 = vunpack.c.l.b16 %v27
  %v72 = vunpack.c.l.b16 %v28
  %v73 = vunpack.c.l.b16 %v29
  %v74 = vunpack.c.l.b16 %v30
  %v75 = vpack.c.b16 %v60, %v59
  %v76 = vpack.c.b16 %v62, %v61
  %v77 = vpack.c.b16 %v64, %v63
  %v78 = vpack.c.b16 %v66, %v65
  %v79 = vpack.c.b16 %v68, %v67
  %v80 = vpack.c.b16 %v70, %v69
  %v81 = vpack.c.b16 %v72, %v71
  %v82 = vpack.c.b16 %v74, %v73
  %v88 = vunpack.c.l.b16 %v31
  %v89 = vunpack.c.l.b16 %v32
  %v90 = vunpack.c.l.b16 %v33
  %v91 = vunpack.c.l.b16 %v34
  %v92 = vunpack.c.l.b16 %v35
  %v93 = vpack.c.b16 %v89, %v88
  %v94 = vpack.c.b16 %v91, %v90
  %v95 = vpack.c.b16 %v92, %v92
  %vm98 = vcmask 293888
  %v100 = vsel %vm98, %v75, 0
  %v103 = vsel %vm98, %v76, 0
  %v106 = vsel %vm98, %v77, 0
  %v109 = vsel %vm98, %v78, 0
  %v112 = vsel %vm98, %v79, 0
  %v115 = vsel %vm98, %v80, 0
  %v118 = vsel %vm98, %v81, 0
  %v121 = vsel %vm98, %v82, 0
  %vm123 = vcmask 1041408
  %v125 = vsel %vm123, %v95, 0
  %127 = vmatprep.subr.bf16.mxu0 0
  %128 = vmatpush1.bf16.msra.mxu0 0
  %129 = vmatprep.subr.bf16.mxu0 0
  %130 = vmatpush1.bf16.msra.mxu0 0
  %131 = vmatprep.subr.bf16.mxu0 0
  %132 = vmatpush1.bf16.msra.mxu0 0
  %133 = vmatprep.subr.bf16.mxu0 0
  %134 = vmatpush1.bf16.msra.mxu0 0
  %135 = vmatprep.subr.bf16.mxu0 0
  %136 = vmatpush1.bf16.msra.mxu0 0
  %137 = vmatprep.subr.bf16.mxu0 0
  %138 = vmatpush1.bf16.msra.mxu0 %v125
  %139 = vmatprep.subr.bf16.mxu0 0
  %140 = vmatpush1.bf16.msra.mxu0 %v94
  %141 = vmatprep.subr.bf16.mxu0 0
  %142 = vmatpush1.bf16.msra.mxu0 %v93
  %143 = vmatprep.subr.bf16.mxu0 0
  %144 = vmatpush2.bf16.msra.mxu0 0
  %145 = vmatprep.subr.bf16.mxu0 0
  %146 = vmatpush2.bf16.msra.mxu0 0
  %147 = vmatprep.subr.bf16.mxu0 0
  %148 = vmatpush2.bf16.msra.mxu0 0
  %149 = vmatprep.subr.bf16.mxu0 0
  %150 = vmatpush2.bf16.msra.mxu0 0
  %151 = vmatprep.subr.bf16.mxu0 0
  %152 = vmatpush2.bf16.msra.mxu0 0
  %153 = vmatprep.subr.bf16.mxu0 0
  %154 = vmatpush2.bf16.msra.mxu0 0
  %155 = vmatprep.subr.bf16.mxu0 0
  %156 = vmatpush2.bf16.msra.mxu0 0
  %157 = vmatprep.subr.bf16.mxu0 0
  %158 = vmatpush2.bf16.msra.mxu0 0
  %159 = vmatprep.mubr.bf16.mxu0 0
  %160 = vmatmul.mubr.bf16.gmra.mxu0 %v100
  %v161 = vpop.f32.mrf.mxu0
  %v162 = vadd.f32 %v41, %v161
  %v163 = vpop.f32.mrf.mxu0
  %v164 = vpop.f32.mrf.mxu0
  %v165 = vadd.f32 %v41, %v164
  %v166 = vpop.f32.mrf.mxu0
  %167 = vmatprep.mubr.bf16.mxu0 0
  %168 = vmatmul.mubr.bf16.gmra.mxu0 %v103
  %v169 = vpop.f32.mrf.mxu0
  %v170 = vadd.f32 %v41, %v169
  %v171 = vpop.f32.mrf.mxu0
  %v172 = vpop.f32.mrf.mxu0
  %v173 = vadd.f32 %v41, %v172
  %v174 = vpop.f32.mrf.mxu0
  %175 = vmatprep.mubr.bf16.mxu0 0
  %176 = vmatmul.mubr.bf16.gmra.mxu0 %v106
  %v177 = vpop.f32.mrf.mxu0
  %v178 = vadd.f32 %v41, %v177
  %v179 = vpop.f32.mrf.mxu0
  %v180 = vpop.f32.mrf.mxu0
  %v181 = vadd.f32 %v41, %v180
  %v182 = vpop.f32.mrf.mxu0
  %183 = vmatprep.mubr.bf16.mxu0 0
  %184 = vmatmul.mubr.bf16.gmra.mxu0 %v109
  %v185 = vpop.f32.mrf.mxu0
  %v186 = vadd.f32 %v41, %v185
  %v187 = vpop.f32.mrf.mxu0
  %v188 = vpop.f32.mrf.mxu0
  %v189 = vadd.f32 %v41, %v188
  %v190 = vpop.f32.mrf.mxu0
  %191 = vmatprep.mubr.bf16.mxu0 0
  %192 = vmatmul.mubr.bf16.gmra.mxu0 %v112
  %v193 = vpop.f32.mrf.mxu0
  %v194 = vadd.f32 %v41, %v193
  %v195 = vpop.f32.mrf.mxu0
  %v196 = vpop.f32.mrf.mxu0
  %v197 = vadd.f32 %v41, %v196
  %v198 = vpop.f32.mrf.mxu0
  %199 = vmatprep.mubr.bf16.mxu0 0
  %200 = vmatmul.mubr.bf16.gmra.mxu0 %v115
  %v201 = vpop.f32.mrf.mxu0
  %v202 = vadd.f32 %v41, %v201
  %v203 = vpop.f32.mrf.mxu0
  %v204 = vpop.f32.mrf.mxu0
  %v205 = vadd.f32 %v41, %v204
  %v206 = vpop.f32.mrf.mxu0
  %207 = vmatprep.mubr.bf16.mxu0 0
  %208 = vmatmul.mubr.bf16.gmra.mxu0 %v118
  %v209 = vpop.f32.mrf.mxu0
  %v210 = vadd.f32 %v41, %v209
  %v211 = vpop.f32.mrf.mxu0
  %v212 = vpop.f32.mrf.mxu0
  %v213 = vadd.f32 %v41, %v212
  %v214 = vpop.f32.mrf.mxu0
  %215 = vmatprep.mubr.bf16.mxu0 0
  %216 = vmatmul.mubr.bf16.gmra.mxu0 %v121
  %v217 = vpop.f32.mrf.mxu0
  %v218 = vadd.f32 %v41, %v217
  %v219 = vpop.f32.mrf.mxu0
  %v220 = vpop.f32.mrf.mxu0
  %v221 = vadd.f32 %v41, %v220
  %v222 = vpop.f32.mrf.mxu0
  %223 = vdwg.mxu0
  %224 = vst [vmem:[%s3] sm:$0xff] %v162
  %225 = vst [vmem:[%s3 + $0x8] sm:$0xff] %v165
  %226 = vst [vmem:[%s3 + $0x10] sm:$0xff] %v170
  %227 = vst [vmem:[%s3 + $0x18] sm:$0xff] %v173
  %228 = vst [vmem:[%s3 + $0x20] sm:$0xff] %v178
  %229 = vst [vmem:[%s3 + $0x28] sm:$0xff] %v181
  %230 = vst [vmem:[%s3 + $0x30] sm:$0xff] %v186
  %231 = vst [vmem:[%s3 + $0x38] sm:$0xff] %v189
  %232 = vst [vmem:[%s3 + $0x40] sm:$0xff] %v194
  %233 = vst [vmem:[%s3 + $0x48] sm:$0xff] %v197
  %234 = vst [vmem:[%s3 + $0x50] sm:$0xff] %v202
  %235 = vst [vmem:[%s3 + $0x58] sm:$0xff] %v205
  %236 = vst [vmem:[%s3 + $0x60] sm:$0xff] %v210
  %237 = vst [vmem:[%s3 + $0x68] sm:$0xff] %v213
  %238 = vst [vmem:[%s3 + $0x70] sm:$0xff] %v218
  %239 = vst [vmem:[%s3 + $0x78] sm:$0xff] %v221
  // Predicated region
  $region14: #{msfb_forward.2} parent=0 // pred_check
    _
  $region15: #{msfb_forward.2} parent=0 // pred_check_branch
    %241 = sbr.rel (0) target = $region17
  $region16: #{msfb_forward.2} parent=0 // pred_region
    _
  $region17: #{msfb_forward.2} parent=0 // pred_fallthru
    _
  // Predicated region
  $region18: #{msfb_forward.2} parent=0 // pred_check
    _
  $region19: #{msfb_forward.2} parent=0 // pred_check_branch
    %243 = sbr.rel (0) target = $region21
  $region20: #{msfb_forward.2} parent=0 // pred_region
    _
  $region21: #{msfb_forward.2} parent=0 // pred_fallthru
    _

// kernel: msfb_forward.3
$region0: #{msfb_forward.3}
  #allocation0 [shape = 'u32[]', space=smem, size = 0x4, offset = 0x4, fixed_abs, tag = 'smem constant byte address 0x4 - core index']
  #allocation1 [shape = 'u32[144,128]{1,0:T(1,128)}', space=vmem, size = 0x12000, scoped, tag = 'internal scratch']
  %s0 = inlined_call_operand.vmem [shape: bf16[128,72], index: 0, kind: input, shape index: {}]
  %s1 = inlined_call_operand.vmem [shape: bf16[72,128], index: 1, kind: input, shape index: {}]
  %s2 = inlined_call_operand.vmem [shape: f32[1,128], index: 2, kind: input, shape index: {}]
  %s3 = inlined_call_operand.vmem [shape: f32[128,128], index: 3, kind: output, shape index: {}]
  %s4 = sld [smem:[#allocation0]]
  $region22: #{msfb_forward.3} parent=0
    _
  %s6 = ssub.s32 1, %s4
  %s7 = scalar_select 0, %s6, %s4
  // Predicated region
  $region2: #{msfb_forward.3} parent=0 // pred_check
    _
  $region3: #{msfb_forward.3} parent=0 // pred_check_branch
    %9 = sbr.rel (0) target = $region5
  $region4: #{msfb_forward.3} parent=0 // pred_region
    _
  $region5: #{msfb_forward.3} parent=0 // pred_fallthru
    _
  // Predicated region
  $region6: #{msfb_forward.3} parent=0 // pred_check
    _
  $region7: #{msfb_forward.3} parent=0 // pred_check_branch
    %11 = sbr.rel (0) target = $region9
  $region8: #{msfb_forward.3} parent=0 // pred_region
    _
  $region9: #{msfb_forward.3} parent=0 // pred_fallthru
    _
  // Predicated region
  $region10: #{msfb_forward.3} parent=0 // pred_check
    _
  $region11: #{msfb_forward.3} parent=0 // pred_check_branch
    %13 = sbr.rel (0) target = $region13
  $region12: #{msfb_forward.3} parent=0 // pred_region
    _
  $region13: #{msfb_forward.3} parent=0 // pred_fallthru
    _
  %v15 = vld [vmem:[%s0] sm:$0xf]
  %v16 = vld [vmem:[%s0 + $0x4] sm:$0xf]
  %v17 = vld [vmem:[%s0 + $0x8] sm:$0xf]
  %v18 = vld [vmem:[%s0 + $0xc] sm:$0xf]
  %v19 = vld [vmem:[%s0 + $0x10] sm:$0xf]
  %v20 = vld [vmem:[%s0 + $0x14] sm:$0xf]
  %v21 = vld [vmem:[%s0 + $0x18] sm:$0xf]
  %v22 = vld [vmem:[%s0 + $0x1c] sm:$0xf]
  %v23 = vld [vmem:[%s0 + $0x20] sm:$0xf]
  %v24 = vld [vmem:[%s0 + $0x24] sm:$0xf]
  %v25 = vld [vmem:[%s0 + $0x28] sm:$0xf]
  %v26 = vld [vmem:[%s0 + $0x2c] sm:$0xf]
  %v27 = vld [vmem:[%s0 + $0x30] sm:$0xf]
  %v28 = vld [vmem:[%s0 + $0x34] sm:$0xf]
  %v29 = vld [vmem:[%s0 + $0x38] sm:$0xf]
  %v30 = vld [vmem:[%s0 + $0x3c] sm:$0xf]
  %v31 = vld [vmem:[%s1] sm:$0xf]
  %v32 = vld [vmem:[%s1 + $0x4] sm:$0xf]
  %v33 = vld [vmem:[%s1 + $0x8] sm:$0xf]
  %v34 = vld [vmem:[%s1 + $0xc] sm:$0xf]
  %v35 = vld [vmem:[%s1 + $0x10] sm:$0xf]
  %v36 = vld [vmem:[%s1 + $0x14] sm:$0xf]
  %v37 = vld [vmem:[%s1 + $0x18] sm:$0xf]
  %v38 = vld [vmem:[%s1 + $0x1c] sm:$0xf]
  %v39 = vld [vmem:[%s1 + $0x20] sm:$0xf]
  %v40 = vld [vmem:[%s2] sm:$0x1]
  %v42 = vlaneseq
  %v43 = vshrl.u32 %v42, 7
  %v44 = vsub.s32 0, %v43
  %v45 = vrot.slane %v40, %v44
  %v63 = vunpack.c.l.b16 %v15
  %v64 = vunpack.c.l.b16 %v16
  %v65 = vunpack.c.l.b16 %v17
  %v66 = vunpack.c.l.b16 %v18
  %v67 = vunpack.c.l.b16 %v19
  %v68 = vunpack.c.l.b16 %v20
  %v69 = vunpack.c.l.b16 %v21
  %v70 = vunpack.c.l.b16 %v22
  %v71 = vunpack.c.l.b16 %v23
  %v72 = vunpack.c.l.b16 %v24
  %v73 = vunpack.c.l.b16 %v25
  %v74 = vunpack.c.l.b16 %v26
  %v75 = vunpack.c.l.b16 %v27
  %v76 = vunpack.c.l.b16 %v28
  %v77 = vunpack.c.l.b16 %v29
  %v78 = vunpack.c.l.b16 %v30
  %v79 = vpack.c.b16 %v64, %v63
  %v80 = vpack.c.b16 %v66, %v65
  %v81 = vpack.c.b16 %v68, %v67
  %v82 = vpack.c.b16 %v70, %v69
  %v83 = vpack.c.b16 %v72, %v71
  %v84 = vpack.c.b16 %v74, %v73
  %v85 = vpack.c.b16 %v76, %v75
  %v86 = vpack.c.b16 %v78, %v77
  %v96 = vunpack.c.l.b16 %v31
  %v97 = vunpack.c.l.b16 %v32
  %v98 = vunpack.c.l.b16 %v33
  %v99 = vunpack.c.l.b16 %v34
  %v100 = vunpack.c.l.b16 %v35
  %v101 = vunpack.c.l.b16 %v36
  %v102 = vunpack.c.l.b16 %v37
  %v103 = vunpack.c.l.b16 %v38
  %v104 = vunpack.c.l.b16 %v39
  %v105 = vpack.c.b16 %v97, %v96
  %v106 = vpack.c.b16 %v99, %v98
  %v107 = vpack.c.b16 %v101, %v100
  %v108 = vpack.c.b16 %v103, %v102
  %v109 = vpack.c.b16 %v104, %v104
  %vm114 = vcmask 588800
  %v116 = vsel %vm114, %v79, 0
  %v119 = vsel %vm114, %v80, 0
  %v122 = vsel %vm114, %v81, 0
  %v125 = vsel %vm114, %v82, 0
  %v128 = vsel %vm114, %v83, 0
  %v131 = vsel %vm114, %v84, 0
  %v134 = vsel %vm114, %v85, 0
  %v137 = vsel %vm114, %v86, 0
  %vm139 = vcmask 1043456
  %v141 = vsel %vm139, %v109, 0
  %143 = vmatprep.subr.bf16.mxu0 0
  %144 = vmatpush1.bf16.msra.mxu0 0
  %145 = vmatprep.subr.bf16.mxu0 0
  %146 = vmatpush1.bf16.msra.mxu0 0
  %147 = vmatprep.subr.bf16.mxu0 0
  %148 = vmatpush1.bf16.msra.mxu0 0
  %149 = vmatprep.subr.bf16.mxu0 0
  %150 = vmatpush1.bf16.msra.mxu0 %v141
  %151 = vmatprep.subr.bf16.mxu0 0
  %152 = vmatpush1.bf16.msra.mxu0 %v108
  %153 = vmatprep.subr.bf16.mxu0 0
  %154 = vmatpush1.bf16.msra.mxu0 %v107
  %155 = vmatprep.subr.bf16.mxu0 0
  %156 = vmatpush1.bf16.msra.mxu0 %v106
  %157 = vmatprep.subr.bf16.mxu0 0
  %158 = vmatpush1.bf16.msra.mxu0 %v105
  %159 = vmatprep.subr.bf16.mxu0 0
  %160 = vmatpush2.bf16.msra.mxu0 0
  %161 = vmatprep.subr.bf16.mxu0 0
  %162 = vmatpush2.bf16.msra.mxu0 0
  %163 = vmatprep.subr.bf16.mxu0 0
  %164 = vmatpush2.bf16.msra.mxu0 0
  %165 = vmatprep.subr.bf16.mxu0 0
  %166 = vmatpush2.bf16.msra.mxu0 0
  %167 = vmatprep.subr.bf16.mxu0 0
  %168 = vmatpush2.bf16.msra.mxu0 0
  %169 = vmatprep.subr.bf16.mxu0 0
  %170 = vmatpush2.bf16.msra.mxu0 0
  %171 = vmatprep.subr.bf16.mxu0 0
  %172 = vmatpush2.bf16.msra.mxu0 0
  %173 = vmatprep.subr.bf16.mxu0 0
  %174 = vmatpush2.bf16.msra.mxu0 0
  %175 = vmatprep.mubr.bf16.mxu0 0
  %176 = vmatmul.mubr.bf16.gmra.mxu0 %v116
  %v177 = vpop.f32.mrf.mxu0
  %v178 = vadd.f32 %v45, %v177
  %v179 = vpop.f32.mrf.mxu0
  %v180 = vpop.f32.mrf.mxu0
  %v181 = vadd.f32 %v45, %v180
  %v182 = vpop.f32.mrf.mxu0
  %183 = vmatprep.mubr.bf16.mxu0 0
  %184 = vmatmul.mubr.bf16.gmra.mxu0 %v119
  %v185 = vpop.f32.mrf.mxu0
  %v186 = vadd.f32 %v45, %v185
  %v187 = vpop.f32.mrf.mxu0
  %v188 = vpop.f32.mrf.mxu0
  %v189 = vadd.f32 %v45, %v188
  %v190 = vpop.f32.mrf.mxu0
  %191 = vmatprep.mubr.bf16.mxu0 0
  %192 = vmatmul.mubr.bf16.gmra.mxu0 %v122
  %v193 = vpop.f32.mrf.mxu0
  %v194 = vadd.f32 %v45, %v193
  %v195 = vpop.f32.mrf.mxu0
  %v196 = vpop.f32.mrf.mxu0
  %v197 = vadd.f32 %v45, %v196
  %v198 = vpop.f32.mrf.mxu0
  %199 = vmatprep.mubr.bf16.mxu0 0
  %200 = vmatmul.mubr.bf16.gmra.mxu0 %v125
  %v201 = vpop.f32.mrf.mxu0
  %v202 = vadd.f32 %v45, %v201
  %v203 = vpop.f32.mrf.mxu0
  %v204 = vpop.f32.mrf.mxu0
  %v205 = vadd.f32 %v45, %v204
  %v206 = vpop.f32.mrf.mxu0
  %207 = vmatprep.mubr.bf16.mxu0 0
  %208 = vmatmul.mubr.bf16.gmra.mxu0 %v128
  %v209 = vpop.f32.mrf.mxu0
  %v210 = vadd.f32 %v45, %v209
  %v211 = vpop.f32.mrf.mxu0
  %v212 = vpop.f32.mrf.mxu0
  %v213 = vadd.f32 %v45, %v212
  %v214 = vpop.f32.mrf.mxu0
  %215 = vmatprep.mubr.bf16.mxu0 0
  %216 = vmatmul.mubr.bf16.gmra.mxu0 %v131
  %v217 = vpop.f32.mrf.mxu0
  %v218 = vadd.f32 %v45, %v217
  %v219 = vpop.f32.mrf.mxu0
  %v220 = vpop.f32.mrf.mxu0
  %v221 = vadd.f32 %v45, %v220
  %v222 = vpop.f32.mrf.mxu0
  %223 = vmatprep.mubr.bf16.mxu0 0
  %224 = vmatmul.mubr.bf16.gmra.mxu0 %v134
  %v225 = vpop.f32.mrf.mxu0
  %v226 = vadd.f32 %v45, %v225
  %v227 = vpop.f32.mrf.mxu0
  %v228 = vpop.f32.mrf.mxu0
  %v229 = vadd.f32 %v45, %v228
  %v230 = vpop.f32.mrf.mxu0
  %231 = vmatprep.mubr.bf16.mxu0 0
  %232 = vmatmul.mubr.bf16.gmra.mxu0 %v137
  %v233 = vpop.f32.mrf.mxu0
  %v234 = vadd.f32 %v45, %v233
  %v235 = vpop.f32.mrf.mxu0
  %v236 = vpop.f32.mrf.mxu0
  %v237 = vadd.f32 %v45, %v236
  %v238 = vpop.f32.mrf.mxu0
  %239 = vdwg.mxu0
  %240 = vst [vmem:[%s3] sm:$0xff] %v178
  %241 = vst [vmem:[%s3 + $0x8] sm:$0xff] %v181
  %242 = vst [vmem:[%s3 + $0x10] sm:$0xff] %v186
  %243 = vst [vmem:[%s3 + $0x18] sm:$0xff] %v189
  %244 = vst [vmem:[%s3 + $0x20] sm:$0xff] %v194
  %245 = vst [vmem:[%s3 + $0x28] sm:$0xff] %v197
  %246 = vst [vmem:[%s3 + $0x30] sm:$0xff] %v202
  %247 = vst [vmem:[%s3 + $0x38] sm:$0xff] %v205
  %248 = vst [vmem:[%s3 + $0x40] sm:$0xff] %v210
  %249 = vst [vmem:[%s3 + $0x48] sm:$0xff] %v213
  %250 = vst [vmem:[%s3 + $0x50] sm:$0xff] %v218
  %251 = vst [vmem:[%s3 + $0x58] sm:$0xff] %v221
  %252 = vst [vmem:[%s3 + $0x60] sm:$0xff] %v226
  %253 = vst [vmem:[%s3 + $0x68] sm:$0xff] %v229
  %254 = vst [vmem:[%s3 + $0x70] sm:$0xff] %v234
  %255 = vst [vmem:[%s3 + $0x78] sm:$0xff] %v237
  // Predicated region
  $region14: #{msfb_forward.3} parent=0 // pred_check
    _
  $region15: #{msfb_forward.3} parent=0 // pred_check_branch
    %257 = sbr.rel (0) target = $region17
  $region16: #{msfb_forward.3} parent=0 // pred_region
    _
  $region17: #{msfb_forward.3} parent=0 // pred_fallthru
    _
  // Predicated region
  $region18: #{msfb_forward.3} parent=0 // pred_check
    _
  $region19: #{msfb_forward.3} parent=0 // pred_check_branch
    %259 = sbr.rel (0) target = $region21
  $region20: #{msfb_forward.3} parent=0 // pred_region
    _
  $region21: #{msfb_forward.3} parent=0 // pred_fallthru
    _

</llo_original>
